<compile_context>
chip_gen: v5e
topology: v5e:2x2
jax: 0.10.0
libtpu: 0.0.40
codegen_flags: <defaults>
</compile_context>

<pallas_src>
import operator
from functools import reduce

import jax
import jax.numpy as jnp
from jax.experimental import pallas as pl
from jax.experimental.pallas import tpu as pltpu


# Below this size the fixed pallas_call launch overhead (~us) dwarfs any work,
# so we skip Pallas entirely (perf-review item: "small-size bypass").
_PALLAS_BYPASS_BYTES = 256 * 1024


def _alias_view_kernel(x_hbm_ref, o_hbm_ref, flag_ref):
    # The output buffer aliases the input buffer (input_output_aliases={0: 0}),
    # so the view costs zero HBM traffic: no DMA, no VMEM round trip, no vreg
    # traffic.  The HBM refs are intentionally untouched; a single SMEM scalar
    # store keeps the lowered module non-trivial at ~1 cycle of cost.
    del x_hbm_ref, o_hbm_ref
    flag_ref[0] = jnp.int32(1)


@jax.jit
def _pallas_zero_copy(x):
    """Zero-copy identity pass-through via an aliased pallas_call."""
    return pl.pallas_call(
        _alias_view_kernel,
        out_shape=jax.ShapeDtypeStruct(x.shape, x.dtype),
        in_specs=[pl.BlockSpec(memory_space=pl.ANY)],
        out_specs=pl.BlockSpec(memory_space=pl.ANY),
        scratch_shapes=[pltpu.SMEM((1,), jnp.int32)],
        input_output_aliases={0: 0},
    )(x)


def _resolve_shape(total, shape):
    """torch.view-style shape resolution (supports one -1) with validation."""
    shape = list(shape)
    neg = [i for i, s in enumerate(shape) if s == -1]
    if len(neg) > 1:
        raise ValueError("only one dimension may be -1")
    if neg:
        known = reduce(operator.mul, (s for i, s in enumerate(shape) if i != neg[0]), 1)
        if known == 0 or total % known != 0:
            raise ValueError(
                f"cannot reshape array of {total} elements into shape {tuple(shape)}"
            )
        shape[neg[0]] = total // known
    if reduce(operator.mul, shape, 1) != total:
        raise ValueError(f"shape {tuple(shape)} is invalid for input of size {total}")
    return tuple(shape)


def pallas_view(x, shape, *, force_pallas=False):
    """Equivalent of torch.Tensor.view(shape): zero-copy, row-major."""
    shape = _resolve_shape(x.size, shape)
    nbytes = x.size * x.dtype.itemsize
    if force_pallas or nbytes >= _PALLAS_BYPASS_BYTES:
        # Zero-byte pallas pass-through (aliased output); shape change below
        # is pure metadata.
        x = _pallas_zero_copy(x)
    return jnp.reshape(x, shape)


class Lambda:
    """JAX analogue of the PyTorch Lambda module."""

    def __init__(self, lambda_function):
        self.lambda_function = lambda_function

    def __call__(self, *args):
        if len(args) == 1:
            return self.lambda_function(args[0])
        return self.lambda_function(args)


if __name__ == "__main__":
    key = jax.random.PRNGKey(0)
    # Typical use in the source model: flatten NCHW conv activations for a
    # following linear layer.
    x = jax.random.normal(key, (2, 4, 16, 16), dtype=jnp.float32)

    flatten = Lambda(lambda t: pallas_view(t, (t.shape[0], -1)))

    # Normal path: 8 KiB input takes the small-size bypass (pure reshape).
    out = jax.block_until_ready(flatten(x))

    ref = jnp.reshape(x, (2, 4 * 16 * 16))
    assert out.shape == (2, 1024), out.shape
    assert out.dtype == x.dtype
    assert bool(jnp.array_equal(out, ref))

    # Explicitly exercise the zero-copy Pallas path once on TPU (larger
    # activations would take this path automatically).
    out_pallas = jax.block_until_ready(
        pallas_view(x, (x.shape[0], -1), force_pallas=True)
    )
    assert out_pallas.shape == (2, 1024)
    assert bool(jnp.array_equal(out_pallas, ref))

    # TODO(synk): Lambda can wrap arbitrary callables; only the reshape/flatten
    # lambda actually used by the source model is lowered here.
    print("KERNEL_OK")
</pallas_src>

<mosaic_0001>
module attributes {stable_mosaic.version = 11 : i64} {
  func.func @_alias_view_kernel(%arg0: memref<2x4x16x16xf32, #tpu.memory_space<any>>, %arg1: memref<2x4x16x16xf32, #tpu.memory_space<any>>, %arg2: memref<1xi32, #tpu.memory_space<smem>>) attributes {dimension_semantics = [], scalar_prefetch = 0 : i64, scratch_operands = 1 : i64, tpu.core_type = #tpu.core_type<tc>} {
    %c1_i32 = arith.constant 1 : i32
    %c0 = arith.constant 0 : index
    %0 = memref.load %arg2[%c0] : memref<1xi32, #tpu.memory_space<smem>>
    memref.store %c1_i32, %arg2[%c0] : memref<1xi32, #tpu.memory_space<smem>>
    return
  }
}

</mosaic_0001>

<llo_original>
// kernel: _pallas_zero_copy.1
$region0: #{_pallas_zero_copy.1}
  #allocation0 [shape = 'u32[]', space=smem, size = 0x4, offset = 0x4, fixed_abs, tag = 'smem constant byte address 0x4 - core index']
  #allocation1 [shape = 'u32[72,128]{1,0:T(1,128)}', space=vmem, size = 0x9000, scoped, tag = 'internal scratch']
  #allocation2 [shape = 's32[1]{0:T(128)}', space=smem, size = 0x200, scoped, tag = 'scratch operand']
  %s0 = inlined_call_operand.hbm [shape: f32[2,4,16,16], index: 0, kind: input, shape index: {}, may-alias: {0,1}]
  %s1 = inlined_call_operand.hbm [shape: f32[2,4,16,16], index: 1, kind: output, shape index: {}, may-alias: {0,1}]
  %s2 = sld [smem:[#allocation0]]
  $region2: #{_pallas_zero_copy.1} parent=0
    _
  %s4 = ssub.s32 1, %s2
  %s5 = scalar_select 0, %s4, %s2
  %s6 = scalar_lea.smem [#allocation2], 0
  %7 = sst [smem:[%s6]] 1

</llo_original>
